<compile_context>
chip_gen: v7x
topology: tpu7x:2x2x1
jax: 0.10.0
libtpu: 0.0.40
codegen_flags: <defaults>
</compile_context>

<pallas_src>
import functools

import jax
import jax.numpy as jnp
from jax.experimental import pallas as pl
from jax.experimental.pallas import tpu as pltpu

LANE = 128     # f32 lane width
SUBLANE = 8    # f32 sublane count


def _round_up(n, m):
    return ((n + m - 1) // m) * m


def _pad2(a, rows, cols):
    return jnp.pad(a, ((0, rows - a.shape[0]), (0, cols - a.shape[1])))


# --------------------------------------------------------------------------- #
# Kernel
# --------------------------------------------------------------------------- #
def actor_mlp_kernel(x_ref, w1_ref, b1_ref, w2_ref, b2_ref, w3_ref, b3_ref, o_ref):
    # fc1: Linear + ReLU  (bf16 operands -> MXU, f32 accumulate, f32 epilogue)
    h1 = jnp.dot(x_ref[...], w1_ref[...], preferred_element_type=jnp.float32)
    h1 = jnp.maximum(h1 + b1_ref[...], 0.0)
    # fc2: Linear + ReLU
    h2 = jnp.dot(h1.astype(w2_ref.dtype), w2_ref[...], preferred_element_type=jnp.float32)
    h2 = jnp.maximum(h2 + b2_ref[...], 0.0)
    # fc3: Linear (no activation)
    out = jnp.dot(h2.astype(w3_ref.dtype), w3_ref[...], preferred_element_type=jnp.float32)
    o_ref[...] = (out + b3_ref[...]).astype(o_ref.dtype)


# --------------------------------------------------------------------------- #
# One-time parameter preparation (pad to hardware-friendly sizes, cast weights)
# --------------------------------------------------------------------------- #
def prepare_actor_params(params, *, matmul_dtype=jnp.bfloat16):
    """Pad/cast weights once.  Returns (padded_params, meta)."""
    w1, b1, w2, b2, w3, b3 = (params[k] for k in ("w1", "b1", "w2", "b2", "w3", "b3"))
    nb_inputs = w1.shape[0]
    nb_hidden = w1.shape[1]
    nb_outputs = w3.shape[1]

    in_p = _round_up(nb_inputs, SUBLANE)     # K of first matmul
    hid_p = _round_up(nb_hidden, LANE)       # lane-dense hidden
    out_p = _round_up(nb_outputs, LANE)      # lane-dense output (unmasked stores)

    padded = dict(
        w1=_pad2(w1, in_p, hid_p).astype(matmul_dtype),
        w2=_pad2(w2, hid_p, hid_p).astype(matmul_dtype),
        w3=_pad2(w3, hid_p, out_p).astype(matmul_dtype),
        b1=_pad2(b1, 1, hid_p).astype(jnp.float32),   # biases stay f32 (f32 epilogue)
        b2=_pad2(b2, 1, hid_p).astype(jnp.float32),
        b3=_pad2(b3, 1, out_p).astype(jnp.float32),
    )
    meta = dict(nb_inputs=nb_inputs, nb_outputs=nb_outputs,
                in_p=in_p, hid_p=hid_p, out_p=out_p, matmul_dtype=matmul_dtype)
    return padded, meta


# --------------------------------------------------------------------------- #
# Forward (jitted; single TPU program: pad x -> fused MLP kernel -> slice)
# --------------------------------------------------------------------------- #
@functools.partial(jax.jit, static_argnames=("nb_outputs", "tile_b", "matmul_dtype"))
def _forward_impl(x, w1p, b1p, w2p, b2p, w3p, b3p, *, nb_outputs, tile_b, matmul_dtype):
    B, nb_inputs = x.shape
    in_p = w1p.shape[0]
    hid_p = w1p.shape[1]
    out_p = w3p.shape[1]

    b_pad = _round_up(max(B, 1), SUBLANE)
    tb = min(tile_b, b_pad)                  # small batches -> a single tile
    b_pad = _round_up(b_pad, tb)

    # Zero padding of x rows/cols keeps padded lanes exactly 0 through
    # matmul + bias + ReLU, so slicing the real outputs back out is exact.
    xp = _pad2(x, b_pad, in_p).astype(matmul_dtype)

    grid = (b_pad // tb,)

    out_padded = pl.pallas_call(
        actor_mlp_kernel,
        out_shape=jax.ShapeDtypeStruct((b_pad, out_p), jnp.float32),
        grid=grid,
        in_specs=[
            # x tile streams over the batch grid axis (double-buffered by Pallas)
            pl.BlockSpec((tb, in_p), lambda i: (i, 0)),
            # weights / biases: constant index_map -> VMEM-resident across steps
            pl.BlockSpec((in_p, hid_p), lambda i: (0, 0)),
            pl.BlockSpec((1, hid_p), lambda i: (0, 0)),
            pl.BlockSpec((hid_p, hid_p), lambda i: (0, 0)),
            pl.BlockSpec((1, hid_p), lambda i: (0, 0)),
            pl.BlockSpec((hid_p, out_p), lambda i: (0, 0)),
            pl.BlockSpec((1, out_p), lambda i: (0, 0)),
        ],
        out_specs=pl.BlockSpec((tb, out_p), lambda i: (i, 0)),
        compiler_params=pltpu.CompilerParams(
            # batch axis is embarrassingly parallel -> shard across v7x's 2 TCs
            dimension_semantics=("parallel",),
            # budget against v7x's 64 MiB physical VMEM; this net uses << that
            vmem_limit_bytes=64 * 1024 * 1024,
        ),
    )(xp, w1p, b1p, w2p, b2p, w3p, b3p)

    return out_padded[:B, :nb_outputs]


def actor_network_forward(x, padded_params, meta, *, tile_b=256):
    """x: (B, nb_inputs) f32.  padded_params/meta: from prepare_actor_params."""
    p = padded_params
    return _forward_impl(
        x, p["w1"], p["b1"], p["w2"], p["b2"], p["w3"], p["b3"],
        nb_outputs=meta["nb_outputs"], tile_b=tile_b, matmul_dtype=meta["matmul_dtype"],
    )


# --------------------------------------------------------------------------- #
# Init + pure-JAX reference
# --------------------------------------------------------------------------- #
def init_params(key, nb_inputs, nb_hidden, nb_outputs):
    """Deterministic init mimicking torch.nn.Linear default U(-1/sqrt(fan_in), +)."""
    ks = jax.random.split(key, 6)

    def lin(kw, kb, fan_in, fan_out):
        bound = 1.0 / jnp.sqrt(jnp.float32(fan_in))
        w = jax.random.uniform(kw, (fan_in, fan_out), jnp.float32, -bound, bound)  # = W.T
        b = jax.random.uniform(kb, (1, fan_out), jnp.float32, -bound, bound)
        return w, b

    w1, b1 = lin(ks[0], ks[1], nb_inputs, nb_hidden)
    w2, b2 = lin(ks[2], ks[3], nb_hidden, nb_hidden)
    w3, b3 = lin(ks[4], ks[5], nb_hidden, nb_outputs)
    return dict(w1=w1, b1=b1, w2=w2, b2=b2, w3=w3, b3=b3)


def reference_forward(x, p):
    h1 = jnp.maximum(x @ p["w1"] + p["b1"], 0.0)
    h2 = jnp.maximum(h1 @ p["w2"] + p["b2"], 0.0)
    return h2 @ p["w3"] + p["b3"]


if __name__ == "__main__":
    nb_inputs, nb_hidden, nb_outputs = 16, 32, 8

    key = jax.random.PRNGKey(0)
    k_x, k_p, k_xl = jax.random.split(key, 3)
    params = init_params(k_p, nb_inputs, nb_hidden, nb_outputs)
    padded_params, meta = prepare_actor_params(params)

    # --- small-shape check (module-consistent: batch=4) ---------------------
    batch = 4
    x = jax.random.normal(k_x, (batch, nb_inputs), jnp.float32)
    out = jax.block_until_ready(actor_network_forward(x, padded_params, meta))
    ref = reference_forward(x, params)
    assert out.shape == (batch, nb_outputs), out.shape
    # bf16 matmul operands with f32 accumulation -> ~1e-3 level error vs f32 ref
    assert jnp.allclose(out, ref, atol=3e-2, rtol=3e-2), "mismatch vs. JAX reference (B=4)"

    # --- batched check: exercises the multi-tile grid path (grid=(2,)) ------
    batch_l = 512
    xl = jax.random.normal(k_xl, (batch_l, nb_inputs), jnp.float32)
    out_l = jax.block_until_ready(actor_network_forward(xl, padded_params, meta))
    ref_l = reference_forward(xl, params)
    assert out_l.shape == (batch_l, nb_outputs), out_l.shape
    assert jnp.allclose(out_l, ref_l, atol=3e-2, rtol=3e-2), "mismatch vs. JAX reference (B=512)"

    print("KERNEL_OK")
</pallas_src>

<mosaic_0001>
module attributes {stable_mosaic.version = 11 : i64} {
  func.func @actor_mlp_kernel(%arg0: i32, %arg1: memref<8x16xbf16, #tpu.memory_space<vmem>>, %arg2: memref<16x128xbf16, #tpu.memory_space<vmem>>, %arg3: memref<1x128xf32, #tpu.memory_space<vmem>>, %arg4: memref<128x128xbf16, #tpu.memory_space<vmem>>, %arg5: memref<1x128xf32, #tpu.memory_space<vmem>>, %arg6: memref<128x128xbf16, #tpu.memory_space<vmem>>, %arg7: memref<1x128xf32, #tpu.memory_space<vmem>>, %arg8: memref<8x128xf32, #tpu.memory_space<vmem>>) attributes {dimension_semantics = [#tpu.dimension_semantics<parallel>], iteration_bounds = array<i64: 1>, scalar_prefetch = 0 : i64, scratch_operands = 0 : i64, tpu.core_type = #tpu.core_type<tc>, window_params = [{transform_indices = @transform_0, window_bounds = array<i64: 8, 16>}, {pipeline_mode = #tpu.pipeline_mode<synchronous>, transform_indices = @transform_1, window_bounds = array<i64: 16, 128>}, {pipeline_mode = #tpu.pipeline_mode<synchronous>, transform_indices = @transform_2, window_bounds = array<i64: 1, 128>}, {pipeline_mode = #tpu.pipeline_mode<synchronous>, transform_indices = @transform_3, window_bounds = array<i64: 128, 128>}, {pipeline_mode = #tpu.pipeline_mode<synchronous>, transform_indices = @transform_4, window_bounds = array<i64: 1, 128>}, {pipeline_mode = #tpu.pipeline_mode<synchronous>, transform_indices = @transform_5, window_bounds = array<i64: 128, 128>}, {pipeline_mode = #tpu.pipeline_mode<synchronous>, transform_indices = @transform_6, window_bounds = array<i64: 1, 128>}, {transform_indices = @transform_7, window_bounds = array<i64: 8, 128>}]} {
    %c0 = arith.constant 0 : index
    %c0_0 = arith.constant 0 : index
    %0 = vector.load %arg1[%c0, %c0_0] : memref<8x16xbf16, #tpu.memory_space<vmem>>, vector<8x16xbf16>
    %c0_1 = arith.constant 0 : index
    %c0_2 = arith.constant 0 : index
    %1 = vector.load %arg2[%c0_1, %c0_2] : memref<16x128xbf16, #tpu.memory_space<vmem>>, vector<16x128xbf16>
    %cst = arith.constant dense<0.000000e+00> : vector<8x128xf32>
    %2 = tpu.matmul %0, %1, %cst {dimension_numbers = #tpu.dot_dimension_numbers<[1], [0], [0], [1], [0, 0, 1, 1], [], []>} : vector<8x16xbf16>, vector<16x128xbf16>, vector<8x128xf32> -> vector<8x128xf32>
    %c0_3 = arith.constant 0 : index
    %c0_4 = arith.constant 0 : index
    %3 = vector.load %arg3[%c0_3, %c0_4] : memref<1x128xf32, #tpu.memory_space<vmem>>, vector<1x128xf32>
    %4 = vector.broadcast %3 : vector<1x128xf32> to vector<8x128xf32>
    %5 = arith.addf %2, %4 : vector<8x128xf32>
    %cst_5 = arith.constant 0.000000e+00 : f32
    %6 = vector.broadcast %cst_5 : f32 to vector<8x128xf32>
    %7 = arith.maximumf %5, %6 : vector<8x128xf32>
    %8 = arith.truncf %7 : vector<8x128xf32> to vector<8x128xbf16>
    %c0_6 = arith.constant 0 : index
    %c0_7 = arith.constant 0 : index
    %9 = vector.load %arg4[%c0_6, %c0_7] : memref<128x128xbf16, #tpu.memory_space<vmem>>, vector<128x128xbf16>
    %cst_8 = arith.constant dense<0.000000e+00> : vector<8x128xf32>
    %10 = tpu.matmul %8, %9, %cst_8 {dimension_numbers = #tpu.dot_dimension_numbers<[1], [0], [0], [1], [0, 0, 1, 1], [], []>} : vector<8x128xbf16>, vector<128x128xbf16>, vector<8x128xf32> -> vector<8x128xf32>
    %c0_9 = arith.constant 0 : index
    %c0_10 = arith.constant 0 : index
    %11 = vector.load %arg5[%c0_9, %c0_10] : memref<1x128xf32, #tpu.memory_space<vmem>>, vector<1x128xf32>
    %12 = vector.broadcast %11 : vector<1x128xf32> to vector<8x128xf32>
    %13 = arith.addf %10, %12 : vector<8x128xf32>
    %cst_11 = arith.constant 0.000000e+00 : f32
    %14 = vector.broadcast %cst_11 : f32 to vector<8x128xf32>
    %15 = arith.maximumf %13, %14 : vector<8x128xf32>
    %16 = arith.truncf %15 : vector<8x128xf32> to vector<8x128xbf16>
    %c0_12 = arith.constant 0 : index
    %c0_13 = arith.constant 0 : index
    %17 = vector.load %arg6[%c0_12, %c0_13] : memref<128x128xbf16, #tpu.memory_space<vmem>>, vector<128x128xbf16>
    %cst_14 = arith.constant dense<0.000000e+00> : vector<8x128xf32>
    %18 = tpu.matmul %16, %17, %cst_14 {dimension_numbers = #tpu.dot_dimension_numbers<[1], [0], [0], [1], [0, 0, 1, 1], [], []>} : vector<8x128xbf16>, vector<128x128xbf16>, vector<8x128xf32> -> vector<8x128xf32>
    %c0_15 = arith.constant 0 : index
    %c0_16 = arith.constant 0 : index
    %19 = vector.load %arg7[%c0_15, %c0_16] : memref<1x128xf32, #tpu.memory_space<vmem>>, vector<1x128xf32>
    %20 = vector.broadcast %19 : vector<1x128xf32> to vector<8x128xf32>
    %21 = arith.addf %18, %20 : vector<8x128xf32>
    %c0_17 = arith.constant 0 : index
    %c0_18 = arith.constant 0 : index
    %22 = vector.load %arg8[%c0_17, %c0_18] : memref<8x128xf32, #tpu.memory_space<vmem>>, vector<8x128xf32>
    tpu.vector_store %arg8[%c0_17, %c0_18], %21 {strides = array<i32>} : memref<8x128xf32, #tpu.memory_space<vmem>>, vector<8x128xf32>,
    return
  }
  func.func @transform_0(%arg0: i32) -> (i32, i32) {
    %c0_i32 = arith.constant 0 : i32
    %c0_i32_0 = arith.constant 0 : i32
    return %arg0, %c0_i32 : i32, i32
  }
  func.func @transform_1(%arg0: i32) -> (i32, i32) {
    %c0_i32 = arith.constant 0 : i32
    %c0_i32_0 = arith.constant 0 : i32
    %c0_i32_1 = arith.constant 0 : i32
    return %c0_i32, %c0_i32_0 : i32, i32
  }
  func.func @transform_2(%arg0: i32) -> (i32, i32) {
    %c0_i32 = arith.constant 0 : i32
    %c0_i32_0 = arith.constant 0 : i32
    %c0_i32_1 = arith.constant 0 : i32
    return %c0_i32, %c0_i32_0 : i32, i32
  }
  func.func @transform_3(%arg0: i32) -> (i32, i32) {
    %c0_i32 = arith.constant 0 : i32
    %c0_i32_0 = arith.constant 0 : i32
    %c0_i32_1 = arith.constant 0 : i32
    return %c0_i32, %c0_i32_0 : i32, i32
  }
  func.func @transform_4(%arg0: i32) -> (i32, i32) {
    %c0_i32 = arith.constant 0 : i32
    %c0_i32_0 = arith.constant 0 : i32
    %c0_i32_1 = arith.constant 0 : i32
    return %c0_i32, %c0_i32_0 : i32, i32
  }
  func.func @transform_5(%arg0: i32) -> (i32, i32) {
    %c0_i32 = arith.constant 0 : i32
    %c0_i32_0 = arith.constant 0 : i32
    %c0_i32_1 = arith.constant 0 : i32
    return %c0_i32, %c0_i32_0 : i32, i32
  }
  func.func @transform_6(%arg0: i32) -> (i32, i32) {
    %c0_i32 = arith.constant 0 : i32
    %c0_i32_0 = arith.constant 0 : i32
    %c0_i32_1 = arith.constant 0 : i32
    return %c0_i32, %c0_i32_0 : i32, i32
  }
  func.func @transform_7(%arg0: i32) -> (i32, i32) {
    %c0_i32 = arith.constant 0 : i32
    %c0_i32_0 = arith.constant 0 : i32
    return %arg0, %c0_i32 : i32, i32
  }
}

</mosaic_0001>

<llo_original>
// kernel: _forward_impl.1
$region0: #{_forward_impl.1}
  #allocation0 [shape = 'u32[]', space=smem, size = 0x4, offset = 0x4, fixed_abs, tag = 'smem constant byte address 0x4 - core index']
  #allocation1 [shape = 'u32[144,128]{1,0:T(1,128)}', space=vmem, size = 0x12000, scoped, tag = 'internal scratch']
  %s0 = inlined_call_operand.hbm [shape: bf16[8,16], index: 0, kind: input, shape index: {}]
  %s1 = inlined_call_operand.hbm [shape: bf16[16,128], index: 1, kind: input, shape index: {}]
  %s2 = inlined_call_operand.hbm [shape: f32[1,128], index: 2, kind: input, shape index: {}]
  %s3 = inlined_call_operand.hbm [shape: bf16[128,128], index: 3, kind: input, shape index: {}]
  %s4 = inlined_call_operand.hbm [shape: f32[1,128], index: 4, kind: input, shape index: {}]
  %s5 = inlined_call_operand.hbm [shape: bf16[128,128], index: 5, kind: input, shape index: {}]
  %s6 = inlined_call_operand.hbm [shape: f32[1,128], index: 6, kind: input, shape index: {}]
  %s7 = inlined_call_operand.hbm [shape: f32[8,128], index: 7, kind: output, shape index: {}]
  %s8 = sld [smem:[#allocation0]]
  $region66: #{_forward_impl.1} parent=0
    _
  %s10 = ssub.s32 1, %s8
  %s11 = scalar_select 0, %s10, %s8
  $region1: #{_forward_impl.1} parent=0
    #allocation2 [shape = 'u8[2048]{0}', space=vmem, size = 0x800, scoped, tag = 'input window, operand 0, single buffered']
    #allocation3 [shape = 's32[1]{0}', space=sflag, size = 0x4, scoped, tag = 'scoped memory for _forward_impl.1']
    #allocation4 [shape = 's32[1]{0}', space=sflag, size = 0x4, scoped, tag = 'scoped memory for _forward_impl.1']
    #allocation5 [shape = 'u8[4096]{0}', space=vmem, size = 0x1000, scoped, tag = 'input window, operand 1, single buffered']
    #allocation6 [shape = 's32[1]{0}', space=sflag, size = 0x4, scoped, tag = 'scoped memory for _forward_impl.1']
    #allocation7 [shape = 'u8[512]{0}', space=vmem, size = 0x400, scoped, tag = 'input window, operand 2, single buffered']
    #allocation8 [shape = 'u8[32768]{0}', space=vmem, size = 0x8000, scoped, tag = 'input window, operand 3, single buffered']
    #allocation9 [shape = 's32[1]{0}', space=sflag, size = 0x4, scoped, tag = 'scoped memory for _forward_impl.1']
    #allocation10 [shape = 'u8[512]{0}', space=vmem, size = 0x400, scoped, tag = 'input window, operand 4, single buffered']
    #allocation11 [shape = 'u8[32768]{0}', space=vmem, size = 0x8000, scoped, tag = 'input window, operand 5, single buffered']
    #allocation12 [shape = 's32[1]{0}', space=sflag, size = 0x4, scoped, tag = 'scoped memory for _forward_impl.1']
    #allocation13 [shape = 'u8[512]{0}', space=vmem, size = 0x400, scoped, tag = 'input window, operand 6, single buffered']
    #allocation14 [shape = 'u8[4096]{0}', space=vmem, size = 0x1000, scoped, tag = 'output window, operand 0, single buffered']
    %12 = vsyncpa [#allocation3], 0
    %13 = vsyncpa [#allocation6], 0
    %14 = vsyncpa [#allocation9], 0
    %15 = vsyncpa [#allocation12], 0
    %16 = vsyncpa [#allocation4], 0
    // Predicated region
    $region2: #{_forward_impl.1} parent=1 // pred_check
      _
    $region3: #{_forward_impl.1} parent=1 // pred_check_branch
      %18 = sbr.rel (0) target = $region5
    $region4: #{_forward_impl.1} parent=1 // pred_region
      %s20 = ssub.s32 64, 64
      %21 = vsyncadd [#allocation3], %s20
      %s23 = sshll.u32 [#allocation2], 4
      %s24 = int_to_ptr.vmem [resolvable:$true] %s23
      %26 = dma.hbm_to_vmem [thread:$0]  %s0, 64, %s24, [#allocation3]
    $region5: #{_forward_impl.1} parent=1 // pred_fallthru
      _
    // Predicated region
    $region6: #{_forward_impl.1} parent=1 // pred_check
      _
    $region7: #{_forward_impl.1} parent=1 // pred_check_branch
      %28 = sbr.rel (0) target = $region9
    $region8: #{_forward_impl.1} parent=1 // pred_region
      %s30 = ssub.s32 128, 128
      %31 = vsyncadd [#allocation6], %s30
      %s32 = sshll.u32 [#allocation5], 4
      %s33 = int_to_ptr.vmem [resolvable:$true] %s32
      %38 = dma.hbm_to_vmem [thread:$0]  %s1, 128, %s33, [#allocation6], 64, 64, 4
    $region9: #{_forward_impl.1} parent=1 // pred_fallthru
      _
    // Predicated region
    $region10: #{_forward_impl.1} parent=1 // pred_check
      _
    $region11: #{_forward_impl.1} parent=1 // pred_check_branch
      %40 = sbr.rel (0) target = $region13
    $region12: #{_forward_impl.1} parent=1 // pred_region
      %s42 = ssub.s32 16, 16
      %43 = vsyncadd [#allocation6], %s42
      %s45 = sshll.u32 [#allocation7], 4
      %s46 = int_to_ptr.vmem [resolvable:$true] %s45
      %48 = dma.hbm_to_vmem [thread:$0]  %s2, 16, %s46, [#allocation6]
    $region13: #{_forward_impl.1} parent=1 // pred_fallthru
      _
    // Predicated region
    $region14: #{_forward_impl.1} parent=1 // pred_check
      _
    $region15: #{_forward_impl.1} parent=1 // pred_check_branch
      %50 = sbr.rel (0) target = $region17
    $region16: #{_forward_impl.1} parent=1 // pred_region
      %s52 = ssub.s32 1024, 1024
      %53 = vsyncadd [#allocation9], %s52
      %s54 = sshll.u32 [#allocation8], 4
      %s55 = int_to_ptr.vmem [resolvable:$true] %s54
      %60 = dma.hbm_to_vmem [thread:$0]  %s3, 1024, %s55, [#allocation9], 64, 64, 4
    $region17: #{_forward_impl.1} parent=1 // pred_fallthru
      _
    // Predicated region
    $region18: #{_forward_impl.1} parent=1 // pred_check
      _
    $region19: #{_forward_impl.1} parent=1 // pred_check_branch
      %62 = sbr.rel (0) target = $region21
    $region20: #{_forward_impl.1} parent=1 // pred_region
      %s64 = ssub.s32 16, 16
      %65 = vsyncadd [#allocation9], %s64
      %s67 = sshll.u32 [#allocation10], 4
      %s68 = int_to_ptr.vmem [resolvable:$true] %s67
      %70 = dma.hbm_to_vmem [thread:$0]  %s4, 16, %s68, [#allocation9]
    $region21: #{_forward_impl.1} parent=1 // pred_fallthru
      _
    // Predicated region
    $region22: #{_forward_impl.1} parent=1 // pred_check
      _
    $region23: #{_forward_impl.1} parent=1 // pred_check_branch
      %72 = sbr.rel (0) target = $region25
    $region24: #{_forward_impl.1} parent=1 // pred_region
      %s74 = ssub.s32 1024, 1024
      %75 = vsyncadd [#allocation12], %s74
      %s76 = sshll.u32 [#allocation11], 4
      %s77 = int_to_ptr.vmem [resolvable:$true] %s76
      %82 = dma.hbm_to_vmem [thread:$0]  %s5, 1024, %s77, [#allocation12], 64, 64, 4
    $region25: #{_forward_impl.1} parent=1 // pred_fallthru
      _
    // Predicated region
    $region26: #{_forward_impl.1} parent=1 // pred_check
      _
    $region27: #{_forward_impl.1} parent=1 // pred_check_branch
      %84 = sbr.rel (0) target = $region29
    $region28: #{_forward_impl.1} parent=1 // pred_region
      %s86 = ssub.s32 16, 16
      %87 = vsyncadd [#allocation12], %s86
      %s89 = sshll.u32 [#allocation13], 4
      %s90 = int_to_ptr.vmem [resolvable:$true] %s89
      %92 = dma.hbm_to_vmem [thread:$0]  %s6, 16, %s90, [#allocation12]
    $region29: #{_forward_impl.1} parent=1 // pred_fallthru
      _
    // Predicated region
    $region30: #{_forward_impl.1} parent=1 // pred_check
      _
    $region31: #{_forward_impl.1} parent=1 // pred_check_branch
      %94 = sbr.rel (0) target = $region33
    $region32: #{_forward_impl.1} parent=1 // pred_region
      %95 = dma.done [#allocation3], 64
    $region33: #{_forward_impl.1} parent=1 // pred_fallthru
      _
    // Predicated region
    $region34: #{_forward_impl.1} parent=1 // pred_check
      _
    $region35: #{_forward_impl.1} parent=1 // pred_check_branch
      %97 = sbr.rel (0) target = $region37
    $region36: #{_forward_impl.1} parent=1 // pred_region
      %98 = dma.done [#allocation6], 128
    $region37: #{_forward_impl.1} parent=1 // pred_fallthru
      _
    // Predicated region
    $region38: #{_forward_impl.1} parent=1 // pred_check
      _
    $region39: #{_forward_impl.1} parent=1 // pred_check_branch
      %100 = sbr.rel (0) target = $region41
    $region40: #{_forward_impl.1} parent=1 // pred_region
      %101 = dma.done [#allocation6], 16
    $region41: #{_forward_impl.1} parent=1 // pred_fallthru
      _
    // Predicated region
    $region42: #{_forward_impl.1} parent=1 // pred_check
      _
    $region43: #{_forward_impl.1} parent=1 // pred_check_branch
      %103 = sbr.rel (0) target = $region45
    $region44: #{_forward_impl.1} parent=1 // pred_region
      %104 = dma.done [#allocation9], 1024
    $region45: #{_forward_impl.1} parent=1 // pred_fallthru
      _
    // Predicated region
    $region46: #{_forward_impl.1} parent=1 // pred_check
      _
    $region47: #{_forward_impl.1} parent=1 // pred_check_branch
      %106 = sbr.rel (0) target = $region49
    $region48: #{_forward_impl.1} parent=1 // pred_region
      %107 = dma.done [#allocation9], 16
    $region49: #{_forward_impl.1} parent=1 // pred_fallthru
      _
    // Predicated region
    $region50: #{_forward_impl.1} parent=1 // pred_check
      _
    $region51: #{_forward_impl.1} parent=1 // pred_check_branch
      %109 = sbr.rel (0) target = $region53
    $region52: #{_forward_impl.1} parent=1 // pred_region
      %110 = dma.done [#allocation12], 1024
    $region53: #{_forward_impl.1} parent=1 // pred_fallthru
      _
    // Predicated region
    $region54: #{_forward_impl.1} parent=1 // pred_check
      _
    $region55: #{_forward_impl.1} parent=1 // pred_check_branch
      %112 = sbr.rel (0) target = $region57
    $region56: #{_forward_impl.1} parent=1 // pred_region
      %113 = dma.done [#allocation12], 16
    $region57: #{_forward_impl.1} parent=1 // pred_fallthru
      _
    %v115 = vld [vmem:[#allocation2] sm:$0xf]
    %v116 = vld [vmem:[#allocation5] sm:$0xf]
    %v117 = vld [vmem:[#allocation5 + $0x4] sm:$0xf]
    %v118 = vld [vmem:[#allocation7] sm:$0x1]
    %v120 = vlaneseq
    %v121 = vshrl.u32 %v120, 7
    %v122 = vsub.s32 0, %v121
    %v123 = vrot.slane %v118, %v122
    %v127 = vunpack.c.l.b16 %v116
    %v128 = vunpack.c.l.b16 %v117
    %v129 = vpack.c.b16 %v128, %v127
    %vm131 = vcmask 130048
    %v133 = vsel %vm131, %v115, 0
    %135 = vmatprep.subr.bf16.mxu0 0
    %136 = vmatpush1.bf16.msra.mxu0 %v129
    %137 = vmatprep.subr.bf16.mxu0 0
    %138 = vmatpush1.bf16.msra.mxu0 0
    %139 = vmatprep.subr.bf16.mxu0 0
    %140 = vmatpush1.bf16.msra.mxu0 0
    %141 = vmatprep.subr.bf16.mxu0 0
    %142 = vmatpush1.bf16.msra.mxu0 0
    %143 = vmatprep.subr.bf16.mxu0 0
    %144 = vmatpush1.bf16.msra.mxu0 0
    %145 = vmatprep.subr.bf16.mxu0 0
    %146 = vmatpush1.bf16.msra.mxu0 0
    %147 = vmatprep.subr.bf16.mxu0 0
    %148 = vmatpush1.bf16.msra.mxu0 0
    %149 = vmatprep.subr.bf16.mxu0 0
    %150 = vmatpush1.bf16.msra.mxu0 0
    %151 = vmatprep.subr.bf16.mxu0 0
    %152 = vmatpush1.bf16.msra.mxu0 0
    %153 = vmatprep.subr.bf16.mxu0 0
    %154 = vmatpush1.bf16.msra.mxu0 0
    %155 = vmatprep.subr.bf16.mxu0 0
    %156 = vmatpush1.bf16.msra.mxu0 0
    %157 = vmatprep.subr.bf16.mxu0 0
    %158 = vmatpush1.bf16.msra.mxu0 0
    %159 = vmatprep.subr.bf16.mxu0 0
    %160 = vmatpush1.bf16.msra.mxu0 0
    %161 = vmatprep.subr.bf16.mxu0 0
    %162 = vmatpush1.bf16.msra.mxu0 0
    %163 = vmatprep.subr.bf16.mxu0 0
    %164 = vmatpush1.bf16.msra.mxu0 0
    %165 = vmatprep.subr.bf16.mxu0 0
    %166 = vmatpush1.bf16.msra.mxu0 0
    %167 = vmatprep.mubr.bf16.mxu0 0
    %168 = vmatmul.mubr.bf16.gmra.mrb[0].mxu0 %v133
    %v169 = vpop.f32.mrb[0].mxu0
    %v170 = vadd.f32 %v123, %v169
    %v171 = vpop.f32.mrb[0].mxu0
    %v172 = vpop.f32.mrb[0].mxu0
    %v173 = vpop.f32.mrb[0].mxu0
    %174 = vdwg.mxu0
    %v175 = vmax.f32 %v170, 0.0
    %v176 = vpack.c.bf16 %v175, %v175
    %v177 = vld [vmem:[#allocation8] sm:$0xf]
    %v178 = vld [vmem:[#allocation8 + $0x4] sm:$0xf]
    %v179 = vld [vmem:[#allocation8 + $0x8] sm:$0xf]
    %v180 = vld [vmem:[#allocation8 + $0xc] sm:$0xf]
    %v181 = vld [vmem:[#allocation8 + $0x10] sm:$0xf]
    %v182 = vld [vmem:[#allocation8 + $0x14] sm:$0xf]
    %v183 = vld [vmem:[#allocation8 + $0x18] sm:$0xf]
    %v184 = vld [vmem:[#allocation8 + $0x1c] sm:$0xf]
    %v185 = vld [vmem:[#allocation8 + $0x20] sm:$0xf]
    %v186 = vld [vmem:[#allocation8 + $0x24] sm:$0xf]
    %v187 = vld [vmem:[#allocation8 + $0x28] sm:$0xf]
    %v188 = vld [vmem:[#allocation8 + $0x2c] sm:$0xf]
    %v189 = vld [vmem:[#allocation8 + $0x30] sm:$0xf]
    %v190 = vld [vmem:[#allocation8 + $0x34] sm:$0xf]
    %v191 = vld [vmem:[#allocation8 + $0x38] sm:$0xf]
    %v192 = vld [vmem:[#allocation8 + $0x3c] sm:$0xf]
    %v193 = vld [vmem:[#allocation10] sm:$0x1]
    %v195 = vlaneseq
    %v196 = vshrl.u32 %v195, 7
    %v197 = vsub.s32 0, %v196
    %v198 = vrot.slane %v193, %v197
    %v216 = vunpack.c.l.b16 %v177
    %v217 = vunpack.c.l.b16 %v178
    %v218 = vunpack.c.l.b16 %v179
    %v219 = vunpack.c.l.b16 %v180
    %v220 = vunpack.c.l.b16 %v181
    %v221 = vunpack.c.l.b16 %v182
    %v222 = vunpack.c.l.b16 %v183
    %v223 = vunpack.c.l.b16 %v184
    %v224 = vunpack.c.l.b16 %v185
    %v225 = vunpack.c.l.b16 %v186
    %v226 = vunpack.c.l.b16 %v187
    %v227 = vunpack.c.l.b16 %v188
    %v228 = vunpack.c.l.b16 %v189
    %v229 = vunpack.c.l.b16 %v190
    %v230 = vunpack.c.l.b16 %v191
    %v231 = vunpack.c.l.b16 %v192
    %v232 = vpack.c.b16 %v217, %v216
    %v233 = vpack.c.b16 %v219, %v218
    %v234 = vpack.c.b16 %v221, %v220
    %v235 = vpack.c.b16 %v223, %v222
    %v236 = vpack.c.b16 %v225, %v224
    %v237 = vpack.c.b16 %v227, %v226
    %v238 = vpack.c.b16 %v229, %v228
    %v239 = vpack.c.b16 %v231, %v230
    %248 = vmatprep.subr.bf16.mxu0 0
    %249 = vmatpush1.bf16.msra.mxu0 %v232
    %250 = vmatprep.subr.bf16.mxu0 0
    %251 = vmatpush1.bf16.msra.mxu0 %v233
    %252 = vmatprep.subr.bf16.mxu0 0
    %253 = vmatpush1.bf16.msra.mxu0 %v234
    %254 = vmatprep.subr.bf16.mxu0 0
    %255 = vmatpush1.bf16.msra.mxu0 %v235
    %256 = vmatprep.subr.bf16.mxu0 0
    %257 = vmatpush1.bf16.msra.mxu0 %v236
    %258 = vmatprep.subr.bf16.mxu0 0
    %259 = vmatpush1.bf16.msra.mxu0 %v237
    %260 = vmatprep.subr.bf16.mxu0 0
    %261 = vmatpush1.bf16.msra.mxu0 %v238
    %262 = vmatprep.subr.bf16.mxu0 0
    %263 = vmatpush1.bf16.msra.mxu0 %v239
    %264 = vmatprep.subr.bf16.mxu0 0
    %265 = vmatpush1.bf16.msra.mxu0 0
    %266 = vmatprep.subr.bf16.mxu0 0
    %267 = vmatpush1.bf16.msra.mxu0 0
    %268 = vmatprep.subr.bf16.mxu0 0
    %269 = vmatpush1.bf16.msra.mxu0 0
    %270 = vmatprep.subr.bf16.mxu0 0
    %271 = vmatpush1.bf16.msra.mxu0 0
    %272 = vmatprep.subr.bf16.mxu0 0
    %273 = vmatpush1.bf16.msra.mxu0 0
    %274 = vmatprep.subr.bf16.mxu0 0
    %275 = vmatpush1.bf16.msra.mxu0 0
    %276 = vmatprep.subr.bf16.mxu0 0
    %277 = vmatpush1.bf16.msra.mxu0 0
    %278 = vmatprep.subr.bf16.mxu0 0
    %279 = vmatpush1.bf16.msra.mxu0 0
    %280 = vmatprep.mubr.bf16.mxu0 0
    %281 = vmatmul.mubr.bf16.gmra.mrb[0].mxu0 %v176
    %v282 = vpop.f32.mrb[0].mxu0
    %v283 = vadd.f32 %v198, %v282
    %v284 = vpop.f32.mrb[0].mxu0
    %v285 = vpop.f32.mrb[0].mxu0
    %v286 = vpop.f32.mrb[0].mxu0
    %287 = vdwg.mxu0
    %v288 = vmax.f32 %v283, 0.0
    %v289 = vpack.c.bf16 %v288, %v288
    %v290 = vld [vmem:[#allocation11] sm:$0xf]
    %v291 = vld [vmem:[#allocation11 + $0x4] sm:$0xf]
    %v292 = vld [vmem:[#allocation11 + $0x8] sm:$0xf]
    %v293 = vld [vmem:[#allocation11 + $0xc] sm:$0xf]
    %v294 = vld [vmem:[#allocation11 + $0x10] sm:$0xf]
    %v295 = vld [vmem:[#allocation11 + $0x14] sm:$0xf]
    %v296 = vld [vmem:[#allocation11 + $0x18] sm:$0xf]
    %v297 = vld [vmem:[#allocation11 + $0x1c] sm:$0xf]
    %v298 = vld [vmem:[#allocation11 + $0x20] sm:$0xf]
    %v299 = vld [vmem:[#allocation11 + $0x24] sm:$0xf]
    %v300 = vld [vmem:[#allocation11 + $0x28] sm:$0xf]
    %v301 = vld [vmem:[#allocation11 + $0x2c] sm:$0xf]
    %v302 = vld [vmem:[#allocation11 + $0x30] sm:$0xf]
    %v303 = vld [vmem:[#allocation11 + $0x34] sm:$0xf]
    %v304 = vld [vmem:[#allocation11 + $0x38] sm:$0xf]
    %v305 = vld [vmem:[#allocation11 + $0x3c] sm:$0xf]
    %v306 = vld [vmem:[#allocation13] sm:$0x1]
    %v308 = vlaneseq
    %v309 = vshrl.u32 %v308, 7
    %v310 = vsub.s32 0, %v309
    %v311 = vrot.slane %v306, %v310
    %v329 = vunpack.c.l.b16 %v290
    %v330 = vunpack.c.l.b16 %v291
    %v331 = vunpack.c.l.b16 %v292
    %v332 = vunpack.c.l.b16 %v293
    %v333 = vunpack.c.l.b16 %v294
    %v334 = vunpack.c.l.b16 %v295
    %v335 = vunpack.c.l.b16 %v296
    %v336 = vunpack.c.l.b16 %v297
    %v337 = vunpack.c.l.b16 %v298
    %v338 = vunpack.c.l.b16 %v299
    %v339 = vunpack.c.l.b16 %v300
    %v340 = vunpack.c.l.b16 %v301
    %v341 = vunpack.c.l.b16 %v302
    %v342 = vunpack.c.l.b16 %v303
    %v343 = vunpack.c.l.b16 %v304
    %v344 = vunpack.c.l.b16 %v305
    %v345 = vpack.c.b16 %v330, %v329
    %v346 = vpack.c.b16 %v332, %v331
    %v347 = vpack.c.b16 %v334, %v333
    %v348 = vpack.c.b16 %v336, %v335
    %v349 = vpack.c.b16 %v338, %v337
    %v350 = vpack.c.b16 %v340, %v339
    %v351 = vpack.c.b16 %v342, %v341
    %v352 = vpack.c.b16 %v344, %v343
    %361 = vmatprep.subr.bf16.mxu0 0
    %362 = vmatpush1.bf16.msra.mxu0 %v345
    %363 = vmatprep.subr.bf16.mxu0 0
    %364 = vmatpush1.bf16.msra.mxu0 %v346
    %365 = vmatprep.subr.bf16.mxu0 0
    %366 = vmatpush1.bf16.msra.mxu0 %v347
    %367 = vmatprep.subr.bf16.mxu0 0
    %368 = vmatpush1.bf16.msra.mxu0 %v348
    %369 = vmatprep.subr.bf16.mxu0 0
    %370 = vmatpush1.bf16.msra.mxu0 %v349
    %371 = vmatprep.subr.bf16.mxu0 0
    %372 = vmatpush1.bf16.msra.mxu0 %v350
    %373 = vmatprep.subr.bf16.mxu0 0
    %374 = vmatpush1.bf16.msra.mxu0 %v351
    %375 = vmatprep.subr.bf16.mxu0 0
    %376 = vmatpush1.bf16.msra.mxu0 %v352
    %377 = vmatprep.subr.bf16.mxu0 0
    %378 = vmatpush1.bf16.msra.mxu0 0
    %379 = vmatprep.subr.bf16.mxu0 0
    %380 = vmatpush1.bf16.msra.mxu0 0
    %381 = vmatprep.subr.bf16.mxu0 0
    %382 = vmatpush1.bf16.msra.mxu0 0
    %383 = vmatprep.subr.bf16.mxu0 0
    %384 = vmatpush1.bf16.msra.mxu0 0
    %385 = vmatprep.subr.bf16.mxu0 0
    %386 = vmatpush1.bf16.msra.mxu0 0
    %387 = vmatprep.subr.bf16.mxu0 0
    %388 = vmatpush1.bf16.msra.mxu0 0
    %389 = vmatprep.subr.bf16.mxu0 0
    %390 = vmatpush1.bf16.msra.mxu0 0
    %391 = vmatprep.subr.bf16.mxu0 0
    %392 = vmatpush1.bf16.msra.mxu0 0
    %393 = vmatprep.mubr.bf16.mxu0 0
    %394 = vmatmul.mubr.bf16.gmra.mrb[0].mxu0 %v289
    %v395 = vpop.f32.mrb[0].mxu0
    %v396 = vadd.f32 %v311, %v395
    %v397 = vpop.f32.mrb[0].mxu0
    %v398 = vpop.f32.mrb[0].mxu0
    %v399 = vpop.f32.mrb[0].mxu0
    %400 = vdwg.mxu0
    %401 = vst [vmem:[#allocation14] sm:$0xff] %v396
    // Predicated region
    $region58: #{_forward_impl.1} parent=1 // pred_check
      _
    $region59: #{_forward_impl.1} parent=1 // pred_check_branch
      %403 = sbr.rel (0) target = $region61
    $region60: #{_forward_impl.1} parent=1 // pred_region
      %s405 = ssub.s32 128, 128
      %406 = vsyncadd [#allocation4], %s405
      %s408 = sshll.u32 [#allocation14], 4
      %s409 = int_to_ptr.vmem [resolvable:$true] %s408
      %411 = dma.vmem_to_hbm [thread:$0]  %s409, 128, %s7, [#allocation4]
    $region61: #{_forward_impl.1} parent=1 // pred_fallthru
      _
    // Predicated region
    $region62: #{_forward_impl.1} parent=1 // pred_check
      _
    $region63: #{_forward_impl.1} parent=1 // pred_check_branch
      %413 = sbr.rel (0) target = $region65
    $region64: #{_forward_impl.1} parent=1 // pred_region
      %414 = dma.done [#allocation4], 128
    $region65: #{_forward_impl.1} parent=1 // pred_fallthru
      _
    %415 = vsyncpa [#allocation3], 1
    %416 = vsyncpa [#allocation6], 1
    %417 = vsyncpa [#allocation9], 1
    %418 = vsyncpa [#allocation12], 1
    %419 = vsyncpa [#allocation4], 1

</llo_original>
